<compile_context>
chip_gen: v5e
topology: v5e:2x2
jax: 0.10.0
libtpu: 0.0.40
codegen_flags: <defaults>
</compile_context>

<pallas_src>
import jax
import jax.numpy as jnp
from jax.experimental import pallas as pl
from jax.experimental.pallas import tpu as pltpu


def _cdiv(a, b):
    return -(-a // b)


def _round_up(n, m):
    return _cdiv(n, m) * m


def _vmem_budget_bytes():
    # ~82% of per-core VMEM capacity: leaves headroom for compiler-internal
    # scratch / MXU result staging (important on v7x where physical VMEM is
    # only 64 MiB).  Falls back to a v7x-safe value if the query is unavailable.
    try:
        cap = int(pltpu.get_tpu_info().vmem_capacity_bytes)
    except Exception:
        cap = 64 * 1024 * 1024
    budget = int(cap * 0.82)
    return max(32 * 1024 * 1024, min(budget, 112 * 1024 * 1024))


def _select_tm(M, H, Hp, in_bytes, out_bytes, resident_bytes, vmem_budget):
    """Largest row-tile (multiple of 8) whose pipelined buffers fit the VMEM budget."""
    # Per-row VMEM: x double-buffered + 2 outputs double-buffered + f32
    # intermediates for the fused dot result (TM, 2*Hp) plus slack.
    per_row = 2 * H * in_bytes + 4 * H * out_bytes + 3 * Hp * 4
    avail = max(vmem_budget - resident_bytes, 8 * per_row)
    tm = (avail // per_row) // 8 * 8
    tm = max(8, min(tm, 2048))
    if M > 8:
        # v7x megacore: keep at least 2 "parallel" grid steps so both TCs work.
        tm = min(tm, _round_up(_cdiv(M, 2), 8))
    tm = min(tm, _round_up(M, 8))
    # Rebalance so a trailing tile is not nearly empty (e.g. M=520 with TM=512).
    tm = _round_up(_cdiv(M, _cdiv(M, tm)), 8)
    return tm


def geometric_box_kernel(x_ref, w_ref, b_ref, center_ref, offset_ref):
    # x_ref:      (TM, H)       VMEM input tile (unpadded hidden dim)
    # w_ref:      (H, 2*Hp)     VMEM fused weights [Wc^T | Wo^T], N-padded, resident
    # b_ref:      (1, H)        VMEM offset bias (f32), resident
    # center_ref: (TM, H)       VMEM output tile
    # offset_ref: (TM, H)       VMEM output tile
    h = center_ref.shape[-1]
    hp = w_ref.shape[-1] // 2          # lane-padded half width (multiple of 128)
    x = x_ref[...]
    # Single fused MXU pass with f32 accumulation.
    y = jnp.dot(x, w_ref[...], preferred_element_type=jnp.float32)
    # Both splits start at lane-aligned offsets (0 and hp).
    center_ref[...] = y[:, :h].astype(center_ref.dtype)
    off = y[:, hp:hp + h] + b_ref[...]             # broadcast (1, H) over rows
    offset_ref[...] = jnp.maximum(off, 0.0).astype(offset_ref.dtype)


def prepare_geometric_box_params(w_center, w_offset, b_offset, dtype=None):
    """One-time parameter prep (do at setup time, not per forward call).

    w_center, w_offset: PyTorch nn.Linear layout (out_features, in_features).
    b_offset: (H,).
    dtype: optional compute dtype for the weights (e.g. jnp.bfloat16 to halve
           HBM traffic; MXU accumulation stays f32).

    Returns (w_cat, b_row):
      w_cat: (H, 2*Hp) = [Wc^T | Wo^T] with each half's output dim zero-padded
             to Hp = round_up(H, 128) (lane-dense MXU output, aligned splits).
      b_row: (1, H) float32 bias row.
    """
    H = w_center.shape[0]
    Hp = _round_up(H, 128)
    wc_t = jnp.transpose(w_center)     # (in, out)
    wo_t = jnp.transpose(w_offset)
    if Hp != H:
        pad = ((0, 0), (0, Hp - H))    # pad output (N) dim only; K stays H
        wc_t = jnp.pad(wc_t, pad)
        wo_t = jnp.pad(wo_t, pad)
    w_cat = jnp.concatenate([wc_t, wo_t], axis=1)  # (H, 2*Hp)
    if dtype is not None:
        w_cat = w_cat.astype(dtype)
    b_row = b_offset.reshape(1, H).astype(jnp.float32)
    return w_cat, b_row


def geometric_box_fwd(x, w_cat, b_row):
    """x: (..., H). w_cat: (H, 2*Hp) fused prepared weights. b_row: (1, H) f32."""
    orig_shape = x.shape
    orig_dtype = x.dtype
    H = orig_shape[-1]
    Hp = w_cat.shape[-1] // 2

    x2d = x.reshape(-1, H)
    if x2d.dtype != w_cat.dtype:
        x2d = x2d.astype(w_cat.dtype)  # bf16 path: halves x HBM traffic
    M = x2d.shape[0]

    in_b = jnp.dtype(x2d.dtype).itemsize
    out_b = jnp.dtype(orig_dtype).itemsize
    w_b = jnp.dtype(w_cat.dtype).itemsize

    vmem_budget = _vmem_budget_bytes()

    cost = pl.CostEstimate(
        flops=int(2 * M * H * (2 * Hp)),
        transcendentals=0,
        bytes_accessed=int(M * H * (in_b + 2 * out_b) + H * 2 * Hp * w_b + H * 4),
    )

    def _call(single_buffered):
        n_resident_bufs = 1 if single_buffered else 2
        resident_bytes = n_resident_bufs * (H * 2 * Hp * w_b + H * 4)
        TM = _select_tm(M, H, Hp, in_b, out_b, resident_bytes, vmem_budget)
        grid = (pl.cdiv(M, TM),)

        if single_buffered:
            # Constant index_map -> block never changes; single buffer halves
            # the resident fused weight's VMEM footprint.
            w_spec = pl.BlockSpec((H, 2 * Hp), lambda i: (0, 0),
                                  pipeline_mode=pl.Buffered(1))
            b_spec = pl.BlockSpec((1, H), lambda i: (0, 0),
                                  pipeline_mode=pl.Buffered(1))
        else:
            w_spec = pl.BlockSpec((H, 2 * Hp), lambda i: (0, 0))
            b_spec = pl.BlockSpec((1, H), lambda i: (0, 0))

        return pl.pallas_call(
            geometric_box_kernel,
            out_shape=(
                jax.ShapeDtypeStruct((M, H), orig_dtype),
                jax.ShapeDtypeStruct((M, H), orig_dtype),
            ),
            grid=grid,
            in_specs=[
                pl.BlockSpec((TM, H), lambda i: (i, 0)),   # x: tiled over rows
                w_spec,                                     # fused weights: resident
                b_spec,                                     # bias: resident
            ],
            out_specs=(
                pl.BlockSpec((TM, H), lambda i: (i, 0)),
                pl.BlockSpec((TM, H), lambda i: (i, 0)),
            ),
            compiler_params=pltpu.CompilerParams(
                dimension_semantics=("parallel",),          # megacore on v7x
                vmem_limit_bytes=vmem_budget,
            ),
            cost_estimate=cost,
        )(x2d, w_cat, b_row)

    try:
        center, offset = _call(True)
    except Exception:
        # Fallback for Pallas builds that reject pipeline_mode / Buffered(1):
        # identical math with default double-buffered resident weights.
        center, offset = _call(False)

    return center.reshape(orig_shape), offset.reshape(orig_shape)


def geometric_box(x, w_center, w_offset, b_offset, dtype=None):
    """Convenience wrapper (prep + forward). For repeated calls, call
    prepare_geometric_box_params once and reuse its outputs."""
    w_cat, b_row = prepare_geometric_box_params(w_center, w_offset, b_offset, dtype)
    return geometric_box_fwd(x, w_cat, b_row)


if __name__ == "__main__":
    batch, seq, hidden = 2, 8, 32

    key = jax.random.PRNGKey(0)
    kx, kc, ko, kb = jax.random.split(key, 4)

    x = jax.random.normal(kx, (batch, seq, hidden), dtype=jnp.float32)
    # PyTorch nn.Linear weight layout: (out_features, in_features).
    w_center = jax.random.normal(kc, (hidden, hidden), dtype=jnp.float32) * 0.1
    w_offset = jax.random.normal(ko, (hidden, hidden), dtype=jnp.float32) * 0.1
    b_offset = jax.random.normal(kb, (hidden,), dtype=jnp.float32) * 0.1

    # One-time parameter prep, then the pipelined kernel forward.
    w_cat, b_row = prepare_geometric_box_params(w_center, w_offset, b_offset)
    center, offset = geometric_box_fwd(x, w_cat, b_row)
    jax.block_until_ready((center, offset))

    # Reference check against plain JAX (same semantics as the PyTorch forward).
    center_ref = x @ w_center.T
    offset_ref = jnp.maximum(x @ w_offset.T + b_offset, 0.0)
    assert jnp.allclose(center, center_ref, atol=1e-5, rtol=1e-5)
    assert jnp.allclose(offset, offset_ref, atol=1e-5, rtol=1e-5)

    print("KERNEL_OK")
</pallas_src>

<mosaic_0001>
module attributes {stable_mosaic.version = 11 : i64} {
  func.func @geometric_box_kernel(%arg0: i32, %arg1: memref<8x32xf32, #tpu.memory_space<vmem>>, %arg2: memref<32x256xf32, #tpu.memory_space<vmem>>, %arg3: memref<1x32xf32, #tpu.memory_space<vmem>>, %arg4: memref<8x32xf32, #tpu.memory_space<vmem>>, %arg5: memref<8x32xf32, #tpu.memory_space<vmem>>) attributes {dimension_semantics = [#tpu.dimension_semantics<parallel>], iteration_bounds = array<i64: 2>, scalar_prefetch = 0 : i64, scratch_operands = 0 : i64, tpu.core_type = #tpu.core_type<tc>, window_params = [{transform_indices = @transform_0, window_bounds = array<i64: 8, 32>}, {pipeline_mode = #tpu.pipeline_mode<synchronous>, transform_indices = @transform_1, window_bounds = array<i64: 32, 256>}, {pipeline_mode = #tpu.pipeline_mode<synchronous>, transform_indices = @transform_2, window_bounds = array<i64: 1, 32>}, {transform_indices = @transform_3, window_bounds = array<i64: 8, 32>}, {transform_indices = @transform_4, window_bounds = array<i64: 8, 32>}]} {
    %c0 = arith.constant 0 : index
    %c0_0 = arith.constant 0 : index
    %0 = vector.load %arg1[%c0, %c0_0] : memref<8x32xf32, #tpu.memory_space<vmem>>, vector<8x32xf32>
    %c0_1 = arith.constant 0 : index
    %c0_2 = arith.constant 0 : index
    %1 = vector.load %arg2[%c0_1, %c0_2] : memref<32x256xf32, #tpu.memory_space<vmem>>, vector<32x256xf32>
    %cst = arith.constant dense<0.000000e+00> : vector<8x256xf32>
    %2 = tpu.matmul %0, %1, %cst {dimension_numbers = #tpu.dot_dimension_numbers<[1], [0], [0], [1], [0, 0, 1, 1], [], []>} : vector<8x32xf32>, vector<32x256xf32>, vector<8x256xf32> -> vector<8x256xf32>
    %3 = vector.extract_strided_slice %2 {offsets = [0, 0], sizes = [8, 32], strides = [1, 1]} : vector<8x256xf32> to vector<8x32xf32>
    %c0_3 = arith.constant 0 : index
    %c0_4 = arith.constant 0 : index
    %4 = vector.load %arg4[%c0_3, %c0_4] : memref<8x32xf32, #tpu.memory_space<vmem>>, vector<8x32xf32>
    tpu.vector_store %arg4[%c0_3, %c0_4], %3 {strides = array<i32>} : memref<8x32xf32, #tpu.memory_space<vmem>>, vector<8x32xf32>,
    %5 = vector.extract_strided_slice %2 {offsets = [0, 128], sizes = [8, 32], strides = [1, 1]} : vector<8x256xf32> to vector<8x32xf32>
    %c0_5 = arith.constant 0 : index
    %c0_6 = arith.constant 0 : index
    %6 = vector.load %arg3[%c0_5, %c0_6] : memref<1x32xf32, #tpu.memory_space<vmem>>, vector<1x32xf32>
    %7 = vector.broadcast %6 : vector<1x32xf32> to vector<8x32xf32>
    %8 = arith.addf %5, %7 : vector<8x32xf32>
    %cst_7 = arith.constant 0.000000e+00 : f32
    %9 = vector.broadcast %cst_7 : f32 to vector<8x32xf32>
    %10 = arith.maximumf %8, %9 : vector<8x32xf32>
    %c0_8 = arith.constant 0 : index
    %c0_9 = arith.constant 0 : index
    %11 = vector.load %arg5[%c0_8, %c0_9] : memref<8x32xf32, #tpu.memory_space<vmem>>, vector<8x32xf32>
    tpu.vector_store %arg5[%c0_8, %c0_9], %10 {strides = array<i32>} : memref<8x32xf32, #tpu.memory_space<vmem>>, vector<8x32xf32>,
    return
  }
  func.func @transform_0(%arg0: i32) -> (i32, i32) {
    %c0_i32 = arith.constant 0 : i32
    %c0_i32_0 = arith.constant 0 : i32
    return %arg0, %c0_i32 : i32, i32
  }
  func.func @transform_1(%arg0: i32) -> (i32, i32) {
    %c0_i32 = arith.constant 0 : i32
    %c0_i32_0 = arith.constant 0 : i32
    %c0_i32_1 = arith.constant 0 : i32
    return %c0_i32, %c0_i32_0 : i32, i32
  }
  func.func @transform_2(%arg0: i32) -> (i32, i32) {
    %c0_i32 = arith.constant 0 : i32
    %c0_i32_0 = arith.constant 0 : i32
    %c0_i32_1 = arith.constant 0 : i32
    return %c0_i32, %c0_i32_0 : i32, i32
  }
  func.func @transform_3(%arg0: i32) -> (i32, i32) {
    %c0_i32 = arith.constant 0 : i32
    %c0_i32_0 = arith.constant 0 : i32
    return %arg0, %c0_i32 : i32, i32
  }
  func.func @transform_4(%arg0: i32) -> (i32, i32) {
    %c0_i32 = arith.constant 0 : i32
    %c0_i32_0 = arith.constant 0 : i32
    return %arg0, %c0_i32 : i32, i32
  }
}

module attributes {stable_mosaic.version = 11 : i64} {
  func.func @geometric_box_kernel(%arg0: i32, %arg1: memref<8x32xf32, #tpu.memory_space<vmem>>, %arg2: memref<32x256xf32, #tpu.memory_space<vmem>>, %arg3: memref<1x32xf32, #tpu.memory_space<vmem>>, %arg4: memref<8x32xf32, #tpu.memory_space<vmem>>, %arg5: memref<8x32xf32, #tpu.memory_space<vmem>>) attributes {dimension_semantics = [#tpu.dimension_semantics<parallel>], iteration_bounds = array<i64: 2>, scalar_prefetch = 0 : i64, scratch_operands = 0 : i64, tpu.core_type = #tpu.core_type<tc>, window_params = [{transform_indices = @transform_0, window_bounds = array<i64: 8, 32>}, {pipeline_mode = #tpu.pipeline_mode<synchronous>, transform_indices = @transform_1, window_bounds = array<i64: 32, 256>}, {pipeline_mode = #tpu.pipeline_mode<synchronous>, transform_indices = @transform_2, window_bounds = array<i64: 1, 32>}, {transform_indices = @transform_3, window_bounds = array<i64: 8, 32>}, {transform_indices = @transform_4, window_bounds = array<i64: 8, 32>}]} {
    %c0 = arith.constant 0 : index
    %c0_0 = arith.constant 0 : index
    %0 = vector.load %arg1[%c0, %c0_0] : memref<8x32xf32, #tpu.memory_space<vmem>>, vector<8x32xf32>
    %c0_1 = arith.constant 0 : index
    %c0_2 = arith.constant 0 : index
    %1 = vector.load %arg2[%c0_1, %c0_2] : memref<32x256xf32, #tpu.memory_space<vmem>>, vector<32x256xf32>
    %cst = arith.constant dense<0.000000e+00> : vector<8x256xf32>
    %2 = tpu.matmul %0, %1, %cst {dimension_numbers = #tpu.dot_dimension_numbers<[1], [0], [0], [1], [0, 0, 1, 1], [], []>} : vector<8x32xf32>, vector<32x256xf32>, vector<8x256xf32> -> vector<8x256xf32>
    %3 = vector.extract_strided_slice %2 {offsets = [0, 0], sizes = [8, 32], strides = [1, 1]} : vector<8x256xf32> to vector<8x32xf32>
    %c0_3 = arith.constant 0 : index
    %c0_4 = arith.constant 0 : index
    %4 = vector.load %arg4[%c0_3, %c0_4] : memref<8x32xf32, #tpu.memory_space<vmem>>, vector<8x32xf32>
    tpu.vector_store %arg4[%c0_3, %c0_4], %3 {strides = array<i32>} : memref<8x32xf32, #tpu.memory_space<vmem>>, vector<8x32xf32>,
    %5 = vector.extract_strided_slice %2 {offsets = [0, 128], sizes = [8, 32], strides = [1, 1]} : vector<8x256xf32> to vector<8x32xf32>
    %c0_5 = arith.constant 0 : index
    %c0_6 = arith.constant 0 : index
    %6 = vector.load %arg3[%c0_5, %c0_6] : memref<1x32xf32, #tpu.memory_space<vmem>>, vector<1x32xf32>
    %7 = vector.broadcast %6 : vector<1x32xf32> to vector<8x32xf32>
    %8 = arith.addf %5, %7 : vector<8x32xf32>
    %cst_7 = arith.constant 0.000000e+00 : f32
    %9 = vector.broadcast %cst_7 : f32 to vector<8x32xf32>
    %10 = arith.maximumf %8, %9 : vector<8x32xf32>
    %c0_8 = arith.constant 0 : index
    %c0_9 = arith.constant 0 : index
    %11 = vector.load %arg5[%c0_8, %c0_9] : memref<8x32xf32, #tpu.memory_space<vmem>>, vector<8x32xf32>
    tpu.vector_store %arg5[%c0_8, %c0_9], %10 {strides = array<i32>} : memref<8x32xf32, #tpu.memory_space<vmem>>, vector<8x32xf32>,
    return
  }
  func.func @transform_0(%arg0: i32) -> (i32, i32) {
    %c0_i32 = arith.constant 0 : i32
    %c0_i32_0 = arith.constant 0 : i32
    return %arg0, %c0_i32 : i32, i32
  }
  func.func @transform_1(%arg0: i32) -> (i32, i32) {
    %c0_i32 = arith.constant 0 : i32
    %c0_i32_0 = arith.constant 0 : i32
    %c0_i32_1 = arith.constant 0 : i32
    return %c0_i32, %c0_i32_0 : i32, i32
  }
  func.func @transform_2(%arg0: i32) -> (i32, i32) {
    %c0_i32 = arith.constant 0 : i32
    %c0_i32_0 = arith.constant 0 : i32
    %c0_i32_1 = arith.constant 0 : i32
    return %c0_i32, %c0_i32_0 : i32, i32
  }
  func.func @transform_3(%arg0: i32) -> (i32, i32) {
    %c0_i32 = arith.constant 0 : i32
    %c0_i32_0 = arith.constant 0 : i32
    return %arg0, %c0_i32 : i32, i32
  }
  func.func @transform_4(%arg0: i32) -> (i32, i32) {
    %c0_i32 = arith.constant 0 : i32
    %c0_i32_0 = arith.constant 0 : i32
    return %arg0, %c0_i32 : i32, i32
  }
}

</mosaic_0001>

<llo_original>
// kernel: tpu_custom_call.1
$region0: #{tpu_custom_call.1}
  #allocation0 [shape = 'u32[]', space=smem, size = 0x4, offset = 0x4, fixed_abs, tag = 'smem constant byte address 0x4 - core index']
  #allocation1 [shape = 'u32[72,128]{1,0:T(1,128)}', space=vmem, size = 0x9000, scoped, tag = 'internal scratch']
  %s0 = inlined_call_operand.hbm [shape: f32[16,32], index: 0, kind: input, shape index: {}]
  %s1 = inlined_call_operand.hbm [shape: f32[32,256], index: 1, kind: input, shape index: {}]
  %s2 = inlined_call_operand.vmem [shape: f32[1,32], index: 2, kind: input, shape index: {}]
  %s3 = inlined_call_operand.hbm [shape: f32[16,32], index: 3, kind: output, shape index: {0}]
  %s4 = inlined_call_operand.hbm [shape: f32[16,32], index: 4, kind: output, shape index: {1}]
  %5 = xla_tuple %s3, %s4
  %s6 = sld [smem:[#allocation0]]
  $region61: #{tpu_custom_call.1} parent=0
    _
  %s8 = ssub.s32 1, %s6
  %s9 = scalar_select 0, %s8, %s6
  $region1: #{tpu_custom_call.1} parent=0
    #allocation2 [shape = 'u8[8192]{0}', space=vmem, size = 0x2000, scoped, tag = 'input window, operand 0']
    #allocation3 [shape = 's32[2]{0}', space=sflag, size = 0x8, scoped, tag = 'scoped memory for tpu_custom_call.1']
    #allocation4 [shape = 's32[2]{0}', space=sflag, size = 0x8, scoped, tag = 'scoped memory for tpu_custom_call.1']
    #allocation5 [shape = 'u8[32768]{0}', space=vmem, size = 0x8000, scoped, tag = 'input window, operand 1, single buffered']
    #allocation6 [shape = 's32[1]{0}', space=sflag, size = 0x4, scoped, tag = 'scoped memory for tpu_custom_call.1']
    #allocation7 [shape = 'u8[8192]{0}', space=vmem, size = 0x2000, scoped, tag = 'output window, operand 0']
    #allocation8 [shape = 'u8[8192]{0}', space=vmem, size = 0x2000, scoped, tag = 'output window, operand 1']
    #allocation9 [shape = 's32[2]{0}', space=sflag, size = 0x8, scoped, tag = 'scoped memory for tpu_custom_call.1']
    %10 = vsyncpa [#allocation3], 0
    %s11 = scalar_lea.sflag [#allocation3], 1
    %12 = vsyncpa %s11, 0
    %13 = vsyncpa [#allocation6], 0
    %14 = vsyncpa [#allocation4], 0
    %s15 = scalar_lea.sflag [#allocation4], 1
    %16 = vsyncpa %s15, 0
    %17 = vsyncpa [#allocation9], 0
    %s18 = scalar_lea.sflag [#allocation9], 1
    %19 = vsyncpa %s18, 0
    loop: start=0, step=1, limit=4
    $region2: #{tpu_custom_call.1} parent=1 // loop_pre_header
      _
    $region3: #{tpu_custom_call.1} parent=1 // loop_header
      %s21 = sphi 0, %s25
      %p22 = scmp.ge.s32.totalorder %s21, 4
      %s31 = sphi 0, %s33
      %s34 = sphi 0, %s31
      %s35 = sphi 0, %s34
      %s51 = sphi 0, %s35
      %s55 = sphi 0, %s55
      %s57 = sphi 0, %s55
      %s58 = sphi 0, %s57
      %s72 = sphi 0, %s58
      %s76 = sphi 0, %s76
      %s78 = sphi 0, %s76
      %s79 = sphi 0, %s78
      %s93 = sphi 0, %s79
      %s99 = sphi 0, %s101
      %s102 = sphi 0, %s99
      %s103 = sphi 0, %s102
      %s119 = sphi 0, %s103
      %s125 = sphi 0, %s127
      %s128 = sphi 0, %s125
      %s129 = sphi 0, %s128
      %s145 = sphi 0, %s129
    $region4: #{tpu_custom_call.1} parent=1 // loop_header_branch
      %24 = sbr.rel (%p22) target = $region8
    $region5: #{tpu_custom_call.1} parent=1 // loop_body
      %s26 = ssub.s32 %s21, 1
      %s27 = ssub.s32 %s21, 2
      %s28 = sadd.s32 %s21, 1
      %s29 = ssub.s32 %s21, %s28
      %p30 = scmp.eq.s32.totalorder %s29, 0
      %s32 = sadd.s32 %s31, 1
      %s33 = scalar_select %p30, %s31, %s32
      %p36 = pneg %p30
      %p37 = scmp.eq.s32.totalorder %s21, 1
      %p38 = por %p36, %p37
      %p39 = scmp.ne.s32.totalorder %s31, %s34
      %p40 = scmp.eq.s32.totalorder %s21, 0
      %p41 = por %p39, %p40
      %p42 = scmp.ne.s32.totalorder %s31, %s34
      %p43 = scmp.eq.s32.totalorder %s26, 1
      %p44 = por %p42, %p43
      %p45 = scmp.ne.s32.totalorder %s34, %s35
      %p46 = scmp.eq.s32.totalorder %s26, 0
      %p47 = por %p45, %p46
      %p48 = scmp.ne.s32.totalorder %s34, %s35
      %p49 = scmp.eq.s32.totalorder %s27, 1
      %p50 = por %p48, %p49
      %p52 = scmp.ne.s32.totalorder %s35, %s51
      %p53 = scmp.eq.s32.totalorder %s27, 0
      %p54 = por %p52, %p53
      %s56 = sadd.s32 %s55, 1
      %p59 = scmp.eq.s32.totalorder %s21, 1
      %p60 = scmp.ne.s32.totalorder %s55, %s57
      %p61 = scmp.eq.s32.totalorder %s21, 0
      %p62 = por %p60, %p61
      %p63 = scmp.ne.s32.totalorder %s55, %s57
      %p64 = scmp.eq.s32.totalorder %s26, 1
      %p65 = por %p63, %p64
      %p66 = scmp.ne.s32.totalorder %s57, %s58
      %p67 = scmp.eq.s32.totalorder %s26, 0
      %p68 = por %p66, %p67
      %p69 = scmp.ne.s32.totalorder %s57, %s58
      %p70 = scmp.eq.s32.totalorder %s27, 1
      %p71 = por %p69, %p70
      %p73 = scmp.ne.s32.totalorder %s58, %s72
      %p74 = scmp.eq.s32.totalorder %s27, 0
      %p75 = por %p73, %p74
      %s77 = sadd.s32 %s76, 1
      %p80 = scmp.eq.s32.totalorder %s21, 1
      %p81 = scmp.ne.s32.totalorder %s76, %s78
      %p82 = scmp.eq.s32.totalorder %s21, 0
      %p83 = por %p81, %p82
      %p84 = scmp.ne.s32.totalorder %s76, %s78
      %p85 = scmp.eq.s32.totalorder %s26, 1
      %p86 = por %p84, %p85
      %p87 = scmp.ne.s32.totalorder %s78, %s79
      %p88 = scmp.eq.s32.totalorder %s26, 0
      %p89 = por %p87, %p88
      %p90 = scmp.ne.s32.totalorder %s78, %s79
      %p91 = scmp.eq.s32.totalorder %s27, 1
      %p92 = por %p90, %p91
      %p94 = scmp.ne.s32.totalorder %s79, %s93
      %p95 = scmp.eq.s32.totalorder %s27, 0
      %p96 = por %p94, %p95
      %s97 = ssub.s32 %s21, %s28
      %p98 = scmp.eq.s32.totalorder %s97, 0
      %s100 = sadd.s32 %s99, 1
      %s101 = scalar_select %p98, %s99, %s100
      %p104 = pneg %p98
      %p105 = scmp.eq.s32.totalorder %s21, 1
      %p106 = por %p104, %p105
      %p107 = scmp.ne.s32.totalorder %s99, %s102
      %p108 = scmp.eq.s32.totalorder %s21, 0
      %p109 = por %p107, %p108
      %p110 = scmp.ne.s32.totalorder %s99, %s102
      %p111 = scmp.eq.s32.totalorder %s26, 1
      %p112 = por %p110, %p111
      %p113 = scmp.ne.s32.totalorder %s102, %s103
      %p114 = scmp.eq.s32.totalorder %s26, 0
      %p115 = por %p113, %p114
      %p116 = scmp.ne.s32.totalorder %s102, %s103
      %p117 = scmp.eq.s32.totalorder %s27, 1
      %p118 = por %p116, %p117
      %p120 = scmp.ne.s32.totalorder %s103, %s119
      %p121 = scmp.eq.s32.totalorder %s27, 0
      %p122 = por %p120, %p121
      %s123 = ssub.s32 %s21, %s28
      %p124 = scmp.eq.s32.totalorder %s123, 0
      %s126 = sadd.s32 %s125, 1
      %s127 = scalar_select %p124, %s125, %s126
      %p130 = pneg %p124
      %p131 = scmp.eq.s32.totalorder %s21, 1
      %p132 = por %p130, %p131
      %p133 = scmp.ne.s32.totalorder %s125, %s128
      %p134 = scmp.eq.s32.totalorder %s21, 0
      %p135 = por %p133, %p134
      %p136 = scmp.ne.s32.totalorder %s125, %s128
      %p137 = scmp.eq.s32.totalorder %s26, 1
      %p138 = por %p136, %p137
      %p139 = scmp.ne.s32.totalorder %s128, %s129
      %p140 = scmp.eq.s32.totalorder %s26, 0
      %p141 = por %p139, %p140
      %p142 = scmp.ne.s32.totalorder %s128, %s129
      %p143 = scmp.eq.s32.totalorder %s27, 1
      %p144 = por %p142, %p143
      %p146 = scmp.ne.s32.totalorder %s129, %s145
      %p147 = scmp.eq.s32.totalorder %s27, 0
      %p148 = por %p146, %p147
      %p149 = scmp.le.s32.totalorder 1, %s21
      %p150 = scmp.lt.s32.totalorder %s21, 3
      %p151 = pnand %p149, %p150
      %p152 = pneg %p151
      // Predicated region
      $region9: #{tpu_custom_call.1} parent=5 // pred_check
        _
      $region10: #{tpu_custom_call.1} parent=5 // pred_check_branch
        %154 = sbr.rel (%p151) target = $region12
      $region11: #{tpu_custom_call.1} parent=5 // pred_region
        %s155 = ssub.s32 %s21, 1
        // Predicated region
        $region13: #{tpu_custom_call.1} parent=11 // pred_check
          %p156 = pneg %p68
        $region14: #{tpu_custom_call.1} parent=11 // pred_check_branch
          %158 = sbr.rel (%p156) target = $region16
        $region15: #{tpu_custom_call.1} parent=11 // pred_region
          %160 = vsyncadd [#allocation6], 0
          %s161 = sshll.u32 %s1, 4
          %s162 = int_to_ptr.hbm [resolvable:$true] %s161
          %s163 = sshll.u32 [#allocation5], 4
          %s164 = int_to_ptr.vmem [resolvable:$true] %s163
          %169 = dma.hbm_to_vmem [thread:$0]  %s162, 1024, %s164, [#allocation6], 256, 256, 16
        $region16: #{tpu_custom_call.1} parent=11 // pred_fallthru
          _
        // Predicated region
        $region17: #{tpu_custom_call.1} parent=11 // pred_check
          %p170 = pneg %p89
        $region18: #{tpu_custom_call.1} parent=11 // pred_check_branch
          %172 = sbr.rel (%p170) target = $region20
        $region19: #{tpu_custom_call.1} parent=11 // pred_region
          _
        $region20: #{tpu_custom_call.1} parent=11 // pred_fallthru
          _
      $region12: #{tpu_custom_call.1} parent=5 // pred_fallthru
        _
      %p173 = scmp.lt.s32.totalorder %s21, 2
      // Predicated region
      $region21: #{tpu_custom_call.1} parent=5 // pred_check
        %p174 = pneg %p173
      $region22: #{tpu_custom_call.1} parent=5 // pred_check_branch
        %176 = sbr.rel (%p174) target = $region24
      $region23: #{tpu_custom_call.1} parent=5 // pred_region
        // Predicated region
        $region25: #{tpu_custom_call.1} parent=23 // pred_check
          %p177 = pneg %p41
        $region26: #{tpu_custom_call.1} parent=23 // pred_check_branch
          %179 = sbr.rel (%p177) target = $region28
        $region27: #{tpu_custom_call.1} parent=23 // pred_region
          %s180 = sand.u32 %s31, 1
          %s181 = scalar_lea.sflag [#allocation3], %s180
          %s182 = sand.u32 %s31, 1
          %s183 = smul.addr %s182, 8
          %s184 = scalar_lea.vmem [#allocation2], %s183
          %186 = vsyncadd %s181, 0
          %s187 = smul.addr %s21, 8
          %s188 = scalar_lea.hbm %s0, %s187
          %s190 = sshll.u32 %s188, 4
          %s191 = int_to_ptr.hbm [resolvable:$true] %s190
          %s192 = sshll.u32 %s184, 4
          %s193 = int_to_ptr.vmem [resolvable:$true] %s192
          %195 = dma.hbm_to_vmem [thread:$0]  %s191, 128, %s193, %s181
        $region28: #{tpu_custom_call.1} parent=23 // pred_fallthru
          _
      $region24: #{tpu_custom_call.1} parent=5 // pred_fallthru
        _
      %p196 = scmp.le.s32.totalorder 1, %s21
      %p197 = scmp.lt.s32.totalorder %s21, 3
      %p198 = pnand %p196, %p197
      %p199 = pneg %p198
      // Predicated region
      $region29: #{tpu_custom_call.1} parent=5 // pred_check
        _
      $region30: #{tpu_custom_call.1} parent=5 // pred_check_branch
        %201 = sbr.rel (%p198) target = $region32
      $region31: #{tpu_custom_call.1} parent=5 // pred_region
        %s202 = ssub.s32 %s21, 1
        %s203 = sand.u32 %s34, 1
        %s204 = scalar_lea.sflag [#allocation3], %s203
        %s205 = sand.u32 %s34, 1
        %s206 = smul.addr %s205, 8
        %s207 = scalar_lea.vmem [#allocation2], %s206
        // Predicated region
        $region33: #{tpu_custom_call.1} parent=31 // pred_check
          %p208 = pneg %p47
        $region34: #{tpu_custom_call.1} parent=31 // pred_check_branch
          %210 = sbr.rel (%p208) target = $region36
        $region35: #{tpu_custom_call.1} parent=31 // pred_region
          %212 = dma.done %s204, 128
        $region36: #{tpu_custom_call.1} parent=31 // pred_fallthru
          _
        // Predicated region
        $region37: #{tpu_custom_call.1} parent=31 // pred_check
          %p213 = pneg %p68
        $region38: #{tpu_custom_call.1} parent=31 // pred_check_branch
          %215 = sbr.rel (%p213) target = $region40
        $region39: #{tpu_custom_call.1} parent=31 // pred_region
          %217 = dma.done [#allocation6], 1024
        $region40: #{tpu_custom_call.1} parent=31 // pred_fallthru
          _
        %s218 = sand.u32 %s34, 1
        %s219 = scalar_lea.sflag [#allocation3], %s218
        %s220 = sand.u32 %s34, 1
        %s221 = smul.addr %s220, 8
        %s222 = scalar_lea.vmem [#allocation2], %s221
        %p223 = pneg %p47
        %p224 = pneg %p44
        %p225 = pneg %p68
        %p226 = pneg %p65
        %p227 = pneg %p89
        %p228 = pneg %p86
        %p229 = pneg %p115
        %p230 = pneg %p112
        %s231 = sand.u32 %s102, 1
        %s232 = scalar_lea.sflag [#allocation4], %s231
        %s233 = sand.u32 %s102, 1
        %s234 = smul.addr %s233, 8
        %s235 = scalar_lea.vmem [#allocation7], %s234
        %p236 = pneg %p141
        %p237 = pneg %p138
        %s238 = sand.u32 %s128, 1
        %s239 = scalar_lea.sflag [#allocation9], %s238
        %s240 = sand.u32 %s128, 1
        %s241 = smul.addr %s240, 8
        %s242 = scalar_lea.vmem [#allocation8], %s241
        %v243 = vld [vmem:[%s207] sm:$0xff]
        %v244 = vld [vmem:[#allocation5] sm:$0xff]
        %v245 = vld [vmem:[#allocation5 + $0x8] sm:$0xff]
        %v246 = vld [vmem:[#allocation5 + $0x10] sm:$0xff]
        %v247 = vld [vmem:[#allocation5 + $0x18] sm:$0xff]
        %v248 = vld [vmem:[#allocation5 + $0x20] sm:$0xff]
        %v249 = vld [vmem:[#allocation5 + $0x28] sm:$0xff]
        %v250 = vld [vmem:[#allocation5 + $0x30] sm:$0xff]
        %v251 = vld [vmem:[#allocation5 + $0x38] sm:$0xff]
        %vm252 = vcmask 261120
        %v254 = vsel %vm252, %v243, 0
        %256 = vmatpush.msra.mxu0 0.0
        %257 = vmatpush.msra.mxu0 0.0
        %258 = vmatpush.msra.mxu0 0.0
        %259 = vmatpush.msra.mxu0 0.0
        %260 = vmatpush.msra.mxu0 0.0
        %261 = vmatpush.msra.mxu0 0.0
        %262 = vmatpush.msra.mxu0 0.0
        %263 = vmatpush.msra.mxu0 0.0
        %264 = vmatpush.msra.mxu0 0.0
        %265 = vmatpush.msra.mxu0 0.0
        %266 = vmatpush.msra.mxu0 0.0
        %267 = vmatpush.msra.mxu0 0.0
        %268 = vmatpush.msra.mxu0 %v250
        %269 = vmatpush.msra.mxu0 %v248
        %270 = vmatpush.msra.mxu0 %v246
        %271 = vmatpush.msra.mxu0 %v244
        %272 = vmatmul.f32.gmra.mxu0 %v254
        %v273 = vpop.f32.mrf.mxu0
        %v274 = vadd.f32 0.0, %v273
        %275 = vdwg.mxu0
        %276 = vmatpush.msra.mxu0 0.0
        %277 = vmatpush.msra.mxu0 0.0
        %278 = vmatpush.msra.mxu0 0.0
        %279 = vmatpush.msra.mxu0 0.0
        %280 = vmatpush.msra.mxu0 0.0
        %281 = vmatpush.msra.mxu0 0.0
        %282 = vmatpush.msra.mxu0 0.0
        %283 = vmatpush.msra.mxu0 0.0
        %284 = vmatpush.msra.mxu0 0.0
        %285 = vmatpush.msra.mxu0 0.0
        %286 = vmatpush.msra.mxu0 0.0
        %287 = vmatpush.msra.mxu0 0.0
        %288 = vmatpush.msra.mxu0 %v251
        %289 = vmatpush.msra.mxu0 %v249
        %290 = vmatpush.msra.mxu0 %v247
        %291 = vmatpush.msra.mxu0 %v245
        %292 = vmatmul.f32.gmra.mxu0 %v254
        %v293 = vpop.f32.mrf.mxu0
        %v294 = vadd.f32 0.0, %v293
        %295 = vdwg.mxu0
        %296 = vst.msk [vmem:[%s235] sm:$0xff] %vm252, %v274
        %v297 = vld [vmem:[%s2] sm:$0x1]
        %v299 = vperm.slane %v297, 0
        %v301 = vadd.f32 %v294, %v299
        %v302 = vmax.f32 %v301, 0.0
        %303 = vst.msk [vmem:[%s242] sm:$0xff] %vm252, %v302
        %s304 = sand.u32 %s102, 1
        %s305 = scalar_lea.sflag [#allocation4], %s304
        %s306 = sand.u32 %s102, 1
        %s307 = smul.addr %s306, 8
        %s308 = scalar_lea.vmem [#allocation7], %s307
        %s309 = sand.u32 %s128, 1
        %s310 = scalar_lea.sflag [#allocation9], %s309
        %s311 = sand.u32 %s128, 1
        %s312 = smul.addr %s311, 8
        %s313 = scalar_lea.vmem [#allocation8], %s312
        // Predicated region
        $region41: #{tpu_custom_call.1} parent=31 // pred_check
          %p314 = pneg %p112
        $region42: #{tpu_custom_call.1} parent=31 // pred_check_branch
          %316 = sbr.rel (%p314) target = $region44
        $region43: #{tpu_custom_call.1} parent=31 // pred_region
          %318 = vsyncadd %s305, 0
          %s319 = smul.addr %s26, 8
          %s320 = scalar_lea.hbm %s3, %s319
          %s322 = sshll.u32 %s308, 4
          %s323 = int_to_ptr.vmem [resolvable:$true] %s322
          %s324 = sshll.u32 %s320, 4
          %s325 = int_to_ptr.hbm [resolvable:$true] %s324
          %327 = dma.vmem_to_hbm [thread:$0]  %s323, 128, %s325, %s305
        $region44: #{tpu_custom_call.1} parent=31 // pred_fallthru
          _
        // Predicated region
        $region45: #{tpu_custom_call.1} parent=31 // pred_check
          %p328 = pneg %p138
        $region46: #{tpu_custom_call.1} parent=31 // pred_check_branch
          %330 = sbr.rel (%p328) target = $region48
        $region47: #{tpu_custom_call.1} parent=31 // pred_region
          %332 = vsyncadd %s310, 0
          %s333 = smul.addr %s26, 8
          %s334 = scalar_lea.hbm %s4, %s333
          %s336 = sshll.u32 %s313, 4
          %s337 = int_to_ptr.vmem [resolvable:$true] %s336
          %s338 = sshll.u32 %s334, 4
          %s339 = int_to_ptr.hbm [resolvable:$true] %s338
          %341 = dma.vmem_to_hbm [thread:$0]  %s337, 128, %s339, %s310
        $region48: #{tpu_custom_call.1} parent=31 // pred_fallthru
          _
      $region32: #{tpu_custom_call.1} parent=5 // pred_fallthru
        _
      %p342 = scmp.le.s32.totalorder 2, %s21
      // Predicated region
      $region49: #{tpu_custom_call.1} parent=5 // pred_check
        %p343 = pneg %p342
      $region50: #{tpu_custom_call.1} parent=5 // pred_check_branch
        %345 = sbr.rel (%p343) target = $region52
      $region51: #{tpu_custom_call.1} parent=5 // pred_region
        %s346 = ssub.s32 %s21, 2
        // Predicated region
        $region53: #{tpu_custom_call.1} parent=51 // pred_check
          %p347 = pneg %p118
        $region54: #{tpu_custom_call.1} parent=51 // pred_check_branch
          %349 = sbr.rel (%p347) target = $region56
        $region55: #{tpu_custom_call.1} parent=51 // pred_region
          %s350 = sand.u32 %s103, 1
          %s351 = scalar_lea.sflag [#allocation4], %s350
          %s352 = sand.u32 %s103, 1
          %s353 = smul.addr %s352, 8
          %s354 = scalar_lea.vmem [#allocation7], %s353
          %356 = dma.done %s351, 128
        $region56: #{tpu_custom_call.1} parent=51 // pred_fallthru
          _
        // Predicated region
        $region57: #{tpu_custom_call.1} parent=51 // pred_check
          %p357 = pneg %p144
        $region58: #{tpu_custom_call.1} parent=51 // pred_check_branch
          %359 = sbr.rel (%p357) target = $region60
        $region59: #{tpu_custom_call.1} parent=51 // pred_region
          %s360 = sand.u32 %s129, 1
          %s361 = scalar_lea.sflag [#allocation9], %s360
          %s362 = sand.u32 %s129, 1
          %s363 = smul.addr %s362, 8
          %s364 = scalar_lea.vmem [#allocation8], %s363
          %366 = dma.done %s361, 128
        $region60: #{tpu_custom_call.1} parent=51 // pred_fallthru
          _
      $region52: #{tpu_custom_call.1} parent=5 // pred_fallthru
        _
    $region6: #{tpu_custom_call.1} parent=1 // loop_footer
      %s25 = sadd.s32 1, %s21
    $region7: #{tpu_custom_call.1} parent=1 // loop_footer_branch
      %20 = sbr.rel target = $region3
    $region8: #{tpu_custom_call.1} parent=1 // loop_exit
      _
    %367 = vsyncpa [#allocation3], 1
    %s368 = scalar_lea.sflag [#allocation3], 1
    %369 = vsyncpa %s368, 1
    %370 = vsyncpa [#allocation6], 1
    %371 = vsyncpa [#allocation4], 1
    %s372 = scalar_lea.sflag [#allocation4], 1
    %373 = vsyncpa %s372, 1
    %374 = vsyncpa [#allocation9], 1
    %s375 = scalar_lea.sflag [#allocation9], 1
    %376 = vsyncpa %s375, 1

// kernel: tpu_custom_call.1
$region0: #{tpu_custom_call.1}
  #allocation0 [shape = 'u32[]', space=smem, size = 0x4, offset = 0x4, fixed_abs, tag = 'smem constant byte address 0x4 - core index']
  #allocation1 [shape = 'u32[72,128]{1,0:T(1,128)}', space=vmem, size = 0x9000, scoped, tag = 'internal scratch']
  %s0 = inlined_call_operand.hbm [shape: f32[16,32], index: 0, kind: input, shape index: {}]
  %s1 = inlined_call_operand.hbm [shape: f32[32,256], index: 1, kind: input, shape index: {}]
  %s2 = inlined_call_operand.vmem [shape: f32[1,32], index: 2, kind: input, shape index: {}]
  %s3 = inlined_call_operand.hbm [shape: f32[16,32], index: 3, kind: output, shape index: {0}]
  %s4 = inlined_call_operand.hbm [shape: f32[16,32], index: 4, kind: output, shape index: {1}]
  %5 = xla_tuple %s3, %s4
  %s6 = sld [smem:[#allocation0]]
  $region61: #{tpu_custom_call.1} parent=0
    _
  %s8 = ssub.s32 1, %s6
  %s9 = scalar_select 0, %s8, %s6
  $region1: #{tpu_custom_call.1} parent=0
    #allocation2 [shape = 'u8[8192]{0}', space=vmem, size = 0x2000, scoped, tag = 'input window, operand 0']
    #allocation3 [shape = 's32[2]{0}', space=sflag, size = 0x8, scoped, tag = 'scoped memory for tpu_custom_call.1']
    #allocation4 [shape = 's32[2]{0}', space=sflag, size = 0x8, scoped, tag = 'scoped memory for tpu_custom_call.1']
    #allocation5 [shape = 'u8[32768]{0}', space=vmem, size = 0x8000, scoped, tag = 'input window, operand 1, single buffered']
    #allocation6 [shape = 's32[1]{0}', space=sflag, size = 0x4, scoped, tag = 'scoped memory for tpu_custom_call.1']
    #allocation7 [shape = 'u8[8192]{0}', space=vmem, size = 0x2000, scoped, tag = 'output window, operand 0']
    #allocation8 [shape = 'u8[8192]{0}', space=vmem, size = 0x2000, scoped, tag = 'output window, operand 1']
    #allocation9 [shape = 's32[2]{0}', space=sflag, size = 0x8, scoped, tag = 'scoped memory for tpu_custom_call.1']
    %10 = vsyncpa [#allocation3], 0
    %s11 = scalar_lea.sflag [#allocation3], 1
    %12 = vsyncpa %s11, 0
    %13 = vsyncpa [#allocation6], 0
    %14 = vsyncpa [#allocation4], 0
    %s15 = scalar_lea.sflag [#allocation4], 1
    %16 = vsyncpa %s15, 0
    %17 = vsyncpa [#allocation9], 0
    %s18 = scalar_lea.sflag [#allocation9], 1
    %19 = vsyncpa %s18, 0
    loop: start=0, step=1, limit=4
    $region2: #{tpu_custom_call.1} parent=1 // loop_pre_header
      _
    $region3: #{tpu_custom_call.1} parent=1 // loop_header
      %s21 = sphi 0, %s25
      %p22 = scmp.ge.s32.totalorder %s21, 4
      %s31 = sphi 0, %s33
      %s34 = sphi 0, %s31
      %s35 = sphi 0, %s34
      %s51 = sphi 0, %s35
      %s55 = sphi 0, %s55
      %s57 = sphi 0, %s55
      %s58 = sphi 0, %s57
      %s72 = sphi 0, %s58
      %s76 = sphi 0, %s76
      %s78 = sphi 0, %s76
      %s79 = sphi 0, %s78
      %s93 = sphi 0, %s79
      %s99 = sphi 0, %s101
      %s102 = sphi 0, %s99
      %s103 = sphi 0, %s102
      %s119 = sphi 0, %s103
      %s125 = sphi 0, %s127
      %s128 = sphi 0, %s125
      %s129 = sphi 0, %s128
      %s145 = sphi 0, %s129
    $region4: #{tpu_custom_call.1} parent=1 // loop_header_branch
      %24 = sbr.rel (%p22) target = $region8
    $region5: #{tpu_custom_call.1} parent=1 // loop_body
      %s26 = ssub.s32 %s21, 1
      %s27 = ssub.s32 %s21, 2
      %s28 = sadd.s32 %s21, 1
      %s29 = ssub.s32 %s21, %s28
      %p30 = scmp.eq.s32.totalorder %s29, 0
      %s32 = sadd.s32 %s31, 1
      %s33 = scalar_select %p30, %s31, %s32
      %p36 = pneg %p30
      %p37 = scmp.eq.s32.totalorder %s21, 1
      %p38 = por %p36, %p37
      %p39 = scmp.ne.s32.totalorder %s31, %s34
      %p40 = scmp.eq.s32.totalorder %s21, 0
      %p41 = por %p39, %p40
      %p42 = scmp.ne.s32.totalorder %s31, %s34
      %p43 = scmp.eq.s32.totalorder %s26, 1
      %p44 = por %p42, %p43
      %p45 = scmp.ne.s32.totalorder %s34, %s35
      %p46 = scmp.eq.s32.totalorder %s26, 0
      %p47 = por %p45, %p46
      %p48 = scmp.ne.s32.totalorder %s34, %s35
      %p49 = scmp.eq.s32.totalorder %s27, 1
      %p50 = por %p48, %p49
      %p52 = scmp.ne.s32.totalorder %s35, %s51
      %p53 = scmp.eq.s32.totalorder %s27, 0
      %p54 = por %p52, %p53
      %s56 = sadd.s32 %s55, 1
      %p59 = scmp.eq.s32.totalorder %s21, 1
      %p60 = scmp.ne.s32.totalorder %s55, %s57
      %p61 = scmp.eq.s32.totalorder %s21, 0
      %p62 = por %p60, %p61
      %p63 = scmp.ne.s32.totalorder %s55, %s57
      %p64 = scmp.eq.s32.totalorder %s26, 1
      %p65 = por %p63, %p64
      %p66 = scmp.ne.s32.totalorder %s57, %s58
      %p67 = scmp.eq.s32.totalorder %s26, 0
      %p68 = por %p66, %p67
      %p69 = scmp.ne.s32.totalorder %s57, %s58
      %p70 = scmp.eq.s32.totalorder %s27, 1
      %p71 = por %p69, %p70
      %p73 = scmp.ne.s32.totalorder %s58, %s72
      %p74 = scmp.eq.s32.totalorder %s27, 0
      %p75 = por %p73, %p74
      %s77 = sadd.s32 %s76, 1
      %p80 = scmp.eq.s32.totalorder %s21, 1
      %p81 = scmp.ne.s32.totalorder %s76, %s78
      %p82 = scmp.eq.s32.totalorder %s21, 0
      %p83 = por %p81, %p82
      %p84 = scmp.ne.s32.totalorder %s76, %s78
      %p85 = scmp.eq.s32.totalorder %s26, 1
      %p86 = por %p84, %p85
      %p87 = scmp.ne.s32.totalorder %s78, %s79
      %p88 = scmp.eq.s32.totalorder %s26, 0
      %p89 = por %p87, %p88
      %p90 = scmp.ne.s32.totalorder %s78, %s79
      %p91 = scmp.eq.s32.totalorder %s27, 1
      %p92 = por %p90, %p91
      %p94 = scmp.ne.s32.totalorder %s79, %s93
      %p95 = scmp.eq.s32.totalorder %s27, 0
      %p96 = por %p94, %p95
      %s97 = ssub.s32 %s21, %s28
      %p98 = scmp.eq.s32.totalorder %s97, 0
      %s100 = sadd.s32 %s99, 1
      %s101 = scalar_select %p98, %s99, %s100
      %p104 = pneg %p98
      %p105 = scmp.eq.s32.totalorder %s21, 1
      %p106 = por %p104, %p105
      %p107 = scmp.ne.s32.totalorder %s99, %s102
      %p108 = scmp.eq.s32.totalorder %s21, 0
      %p109 = por %p107, %p108
      %p110 = scmp.ne.s32.totalorder %s99, %s102
      %p111 = scmp.eq.s32.totalorder %s26, 1
      %p112 = por %p110, %p111
      %p113 = scmp.ne.s32.totalorder %s102, %s103
      %p114 = scmp.eq.s32.totalorder %s26, 0
      %p115 = por %p113, %p114
      %p116 = scmp.ne.s32.totalorder %s102, %s103
      %p117 = scmp.eq.s32.totalorder %s27, 1
      %p118 = por %p116, %p117
      %p120 = scmp.ne.s32.totalorder %s103, %s119
      %p121 = scmp.eq.s32.totalorder %s27, 0
      %p122 = por %p120, %p121
      %s123 = ssub.s32 %s21, %s28
      %p124 = scmp.eq.s32.totalorder %s123, 0
      %s126 = sadd.s32 %s125, 1
      %s127 = scalar_select %p124, %s125, %s126
      %p130 = pneg %p124
      %p131 = scmp.eq.s32.totalorder %s21, 1
      %p132 = por %p130, %p131
      %p133 = scmp.ne.s32.totalorder %s125, %s128
      %p134 = scmp.eq.s32.totalorder %s21, 0
      %p135 = por %p133, %p134
      %p136 = scmp.ne.s32.totalorder %s125, %s128
      %p137 = scmp.eq.s32.totalorder %s26, 1
      %p138 = por %p136, %p137
      %p139 = scmp.ne.s32.totalorder %s128, %s129
      %p140 = scmp.eq.s32.totalorder %s26, 0
      %p141 = por %p139, %p140
      %p142 = scmp.ne.s32.totalorder %s128, %s129
      %p143 = scmp.eq.s32.totalorder %s27, 1
      %p144 = por %p142, %p143
      %p146 = scmp.ne.s32.totalorder %s129, %s145
      %p147 = scmp.eq.s32.totalorder %s27, 0
      %p148 = por %p146, %p147
      %p149 = scmp.le.s32.totalorder 1, %s21
      %p150 = scmp.lt.s32.totalorder %s21, 3
      %p151 = pnand %p149, %p150
      %p152 = pneg %p151
      // Predicated region
      $region9: #{tpu_custom_call.1} parent=5 // pred_check
        _
      $region10: #{tpu_custom_call.1} parent=5 // pred_check_branch
        %154 = sbr.rel (%p151) target = $region12
      $region11: #{tpu_custom_call.1} parent=5 // pred_region
        %s155 = ssub.s32 %s21, 1
        // Predicated region
        $region13: #{tpu_custom_call.1} parent=11 // pred_check
          %p156 = pneg %p68
        $region14: #{tpu_custom_call.1} parent=11 // pred_check_branch
          %158 = sbr.rel (%p156) target = $region16
        $region15: #{tpu_custom_call.1} parent=11 // pred_region
          %160 = vsyncadd [#allocation6], 0
          %s161 = sshll.u32 %s1, 4
          %s162 = int_to_ptr.hbm [resolvable:$true] %s161
          %s163 = sshll.u32 [#allocation5], 4
          %s164 = int_to_ptr.vmem [resolvable:$true] %s163
          %169 = dma.hbm_to_vmem [thread:$0]  %s162, 1024, %s164, [#allocation6], 256, 256, 16
        $region16: #{tpu_custom_call.1} parent=11 // pred_fallthru
          _
        // Predicated region
        $region17: #{tpu_custom_call.1} parent=11 // pred_check
          %p170 = pneg %p89
        $region18: #{tpu_custom_call.1} parent=11 // pred_check_branch
          %172 = sbr.rel (%p170) target = $region20
        $region19: #{tpu_custom_call.1} parent=11 // pred_region
          _
        $region20: #{tpu_custom_call.1} parent=11 // pred_fallthru
          _
      $region12: #{tpu_custom_call.1} parent=5 // pred_fallthru
        _
      %p173 = scmp.lt.s32.totalorder %s21, 2
      // Predicated region
      $region21: #{tpu_custom_call.1} parent=5 // pred_check
        %p174 = pneg %p173
      $region22: #{tpu_custom_call.1} parent=5 // pred_check_branch
        %176 = sbr.rel (%p174) target = $region24
      $region23: #{tpu_custom_call.1} parent=5 // pred_region
        // Predicated region
        $region25: #{tpu_custom_call.1} parent=23 // pred_check
          %p177 = pneg %p41
        $region26: #{tpu_custom_call.1} parent=23 // pred_check_branch
          %179 = sbr.rel (%p177) target = $region28
        $region27: #{tpu_custom_call.1} parent=23 // pred_region
          %s180 = sand.u32 %s31, 1
          %s181 = scalar_lea.sflag [#allocation3], %s180
          %s182 = sand.u32 %s31, 1
          %s183 = smul.addr %s182, 8
          %s184 = scalar_lea.vmem [#allocation2], %s183
          %186 = vsyncadd %s181, 0
          %s187 = smul.addr %s21, 8
          %s188 = scalar_lea.hbm %s0, %s187
          %s190 = sshll.u32 %s188, 4
          %s191 = int_to_ptr.hbm [resolvable:$true] %s190
          %s192 = sshll.u32 %s184, 4
          %s193 = int_to_ptr.vmem [resolvable:$true] %s192
          %195 = dma.hbm_to_vmem [thread:$0]  %s191, 128, %s193, %s181
        $region28: #{tpu_custom_call.1} parent=23 // pred_fallthru
          _
      $region24: #{tpu_custom_call.1} parent=5 // pred_fallthru
        _
      %p196 = scmp.le.s32.totalorder 1, %s21
      %p197 = scmp.lt.s32.totalorder %s21, 3
      %p198 = pnand %p196, %p197
      %p199 = pneg %p198
      // Predicated region
      $region29: #{tpu_custom_call.1} parent=5 // pred_check
        _
      $region30: #{tpu_custom_call.1} parent=5 // pred_check_branch
        %201 = sbr.rel (%p198) target = $region32
      $region31: #{tpu_custom_call.1} parent=5 // pred_region
        %s202 = ssub.s32 %s21, 1
        %s203 = sand.u32 %s34, 1
        %s204 = scalar_lea.sflag [#allocation3], %s203
        %s205 = sand.u32 %s34, 1
        %s206 = smul.addr %s205, 8
        %s207 = scalar_lea.vmem [#allocation2], %s206
        // Predicated region
        $region33: #{tpu_custom_call.1} parent=31 // pred_check
          %p208 = pneg %p47
        $region34: #{tpu_custom_call.1} parent=31 // pred_check_branch
          %210 = sbr.rel (%p208) target = $region36
        $region35: #{tpu_custom_call.1} parent=31 // pred_region
          %212 = dma.done %s204, 128
        $region36: #{tpu_custom_call.1} parent=31 // pred_fallthru
          _
        // Predicated region
        $region37: #{tpu_custom_call.1} parent=31 // pred_check
          %p213 = pneg %p68
        $region38: #{tpu_custom_call.1} parent=31 // pred_check_branch
          %215 = sbr.rel (%p213) target = $region40
        $region39: #{tpu_custom_call.1} parent=31 // pred_region
          %217 = dma.done [#allocation6], 1024
        $region40: #{tpu_custom_call.1} parent=31 // pred_fallthru
          _
        %s218 = sand.u32 %s34, 1
        %s219 = scalar_lea.sflag [#allocation3], %s218
        %s220 = sand.u32 %s34, 1
        %s221 = smul.addr %s220, 8
        %s222 = scalar_lea.vmem [#allocation2], %s221
        %p223 = pneg %p47
        %p224 = pneg %p44
        %p225 = pneg %p68
        %p226 = pneg %p65
        %p227 = pneg %p89
        %p228 = pneg %p86
        %p229 = pneg %p115
        %p230 = pneg %p112
        %s231 = sand.u32 %s102, 1
        %s232 = scalar_lea.sflag [#allocation4], %s231
        %s233 = sand.u32 %s102, 1
        %s234 = smul.addr %s233, 8
        %s235 = scalar_lea.vmem [#allocation7], %s234
        %p236 = pneg %p141
        %p237 = pneg %p138
        %s238 = sand.u32 %s128, 1
        %s239 = scalar_lea.sflag [#allocation9], %s238
        %s240 = sand.u32 %s128, 1
        %s241 = smul.addr %s240, 8
        %s242 = scalar_lea.vmem [#allocation8], %s241
        %v243 = vld [vmem:[%s207] sm:$0xff]
        %v244 = vld [vmem:[#allocation5] sm:$0xff]
        %v245 = vld [vmem:[#allocation5 + $0x8] sm:$0xff]
        %v246 = vld [vmem:[#allocation5 + $0x10] sm:$0xff]
        %v247 = vld [vmem:[#allocation5 + $0x18] sm:$0xff]
        %v248 = vld [vmem:[#allocation5 + $0x20] sm:$0xff]
        %v249 = vld [vmem:[#allocation5 + $0x28] sm:$0xff]
        %v250 = vld [vmem:[#allocation5 + $0x30] sm:$0xff]
        %v251 = vld [vmem:[#allocation5 + $0x38] sm:$0xff]
        %vm252 = vcmask 261120
        %v254 = vsel %vm252, %v243, 0
        %256 = vmatpush.msra.mxu0 0.0
        %257 = vmatpush.msra.mxu0 0.0
        %258 = vmatpush.msra.mxu0 0.0
        %259 = vmatpush.msra.mxu0 0.0
        %260 = vmatpush.msra.mxu0 0.0
        %261 = vmatpush.msra.mxu0 0.0
        %262 = vmatpush.msra.mxu0 0.0
        %263 = vmatpush.msra.mxu0 0.0
        %264 = vmatpush.msra.mxu0 0.0
        %265 = vmatpush.msra.mxu0 0.0
        %266 = vmatpush.msra.mxu0 0.0
        %267 = vmatpush.msra.mxu0 0.0
        %268 = vmatpush.msra.mxu0 %v250
        %269 = vmatpush.msra.mxu0 %v248
        %270 = vmatpush.msra.mxu0 %v246
        %271 = vmatpush.msra.mxu0 %v244
        %272 = vmatmul.f32.gmra.mxu0 %v254
        %v273 = vpop.f32.mrf.mxu0
        %v274 = vadd.f32 0.0, %v273
        %275 = vdwg.mxu0
        %276 = vmatpush.msra.mxu0 0.0
        %277 = vmatpush.msra.mxu0 0.0
        %278 = vmatpush.msra.mxu0 0.0
        %279 = vmatpush.msra.mxu0 0.0
        %280 = vmatpush.msra.mxu0 0.0
        %281 = vmatpush.msra.mxu0 0.0
        %282 = vmatpush.msra.mxu0 0.0
        %283 = vmatpush.msra.mxu0 0.0
        %284 = vmatpush.msra.mxu0 0.0
        %285 = vmatpush.msra.mxu0 0.0
        %286 = vmatpush.msra.mxu0 0.0
        %287 = vmatpush.msra.mxu0 0.0
        %288 = vmatpush.msra.mxu0 %v251
        %289 = vmatpush.msra.mxu0 %v249
        %290 = vmatpush.msra.mxu0 %v247
        %291 = vmatpush.msra.mxu0 %v245
        %292 = vmatmul.f32.gmra.mxu0 %v254
        %v293 = vpop.f32.mrf.mxu0
        %v294 = vadd.f32 0.0, %v293
        %295 = vdwg.mxu0
        %296 = vst.msk [vmem:[%s235] sm:$0xff] %vm252, %v274
        %v297 = vld [vmem:[%s2] sm:$0x1]
        %v299 = vperm.slane %v297, 0
        %v301 = vadd.f32 %v294, %v299
        %v302 = vmax.f32 %v301, 0.0
        %303 = vst.msk [vmem:[%s242] sm:$0xff] %vm252, %v302
        %s304 = sand.u32 %s102, 1
        %s305 = scalar_lea.sflag [#allocation4], %s304
        %s306 = sand.u32 %s102, 1
        %s307 = smul.addr %s306, 8
        %s308 = scalar_lea.vmem [#allocation7], %s307
        %s309 = sand.u32 %s128, 1
        %s310 = scalar_lea.sflag [#allocation9], %s309
        %s311 = sand.u32 %s128, 1
        %s312 = smul.addr %s311, 8
        %s313 = scalar_lea.vmem [#allocation8], %s312
        // Predicated region
        $region41: #{tpu_custom_call.1} parent=31 // pred_check
          %p314 = pneg %p112
        $region42: #{tpu_custom_call.1} parent=31 // pred_check_branch
          %316 = sbr.rel (%p314) target = $region44
        $region43: #{tpu_custom_call.1} parent=31 // pred_region
          %318 = vsyncadd %s305, 0
          %s319 = smul.addr %s26, 8
          %s320 = scalar_lea.hbm %s3, %s319
          %s322 = sshll.u32 %s308, 4
          %s323 = int_to_ptr.vmem [resolvable:$true] %s322
          %s324 = sshll.u32 %s320, 4
          %s325 = int_to_ptr.hbm [resolvable:$true] %s324
          %327 = dma.vmem_to_hbm [thread:$0]  %s323, 128, %s325, %s305
        $region44: #{tpu_custom_call.1} parent=31 // pred_fallthru
          _
        // Predicated region
        $region45: #{tpu_custom_call.1} parent=31 // pred_check
          %p328 = pneg %p138
        $region46: #{tpu_custom_call.1} parent=31 // pred_check_branch
          %330 = sbr.rel (%p328) target = $region48
        $region47: #{tpu_custom_call.1} parent=31 // pred_region
          %332 = vsyncadd %s310, 0
          %s333 = smul.addr %s26, 8
          %s334 = scalar_lea.hbm %s4, %s333
          %s336 = sshll.u32 %s313, 4
          %s337 = int_to_ptr.vmem [resolvable:$true] %s336
          %s338 = sshll.u32 %s334, 4
          %s339 = int_to_ptr.hbm [resolvable:$true] %s338
          %341 = dma.vmem_to_hbm [thread:$0]  %s337, 128, %s339, %s310
        $region48: #{tpu_custom_call.1} parent=31 // pred_fallthru
          _
      $region32: #{tpu_custom_call.1} parent=5 // pred_fallthru
        _
      %p342 = scmp.le.s32.totalorder 2, %s21
      // Predicated region
      $region49: #{tpu_custom_call.1} parent=5 // pred_check
        %p343 = pneg %p342
      $region50: #{tpu_custom_call.1} parent=5 // pred_check_branch
        %345 = sbr.rel (%p343) target = $region52
      $region51: #{tpu_custom_call.1} parent=5 // pred_region
        %s346 = ssub.s32 %s21, 2
        // Predicated region
        $region53: #{tpu_custom_call.1} parent=51 // pred_check
          %p347 = pneg %p118
        $region54: #{tpu_custom_call.1} parent=51 // pred_check_branch
          %349 = sbr.rel (%p347) target = $region56
        $region55: #{tpu_custom_call.1} parent=51 // pred_region
          %s350 = sand.u32 %s103, 1
          %s351 = scalar_lea.sflag [#allocation4], %s350
          %s352 = sand.u32 %s103, 1
          %s353 = smul.addr %s352, 8
          %s354 = scalar_lea.vmem [#allocation7], %s353
          %356 = dma.done %s351, 128
        $region56: #{tpu_custom_call.1} parent=51 // pred_fallthru
          _
        // Predicated region
        $region57: #{tpu_custom_call.1} parent=51 // pred_check
          %p357 = pneg %p144
        $region58: #{tpu_custom_call.1} parent=51 // pred_check_branch
          %359 = sbr.rel (%p357) target = $region60
        $region59: #{tpu_custom_call.1} parent=51 // pred_region
          %s360 = sand.u32 %s129, 1
          %s361 = scalar_lea.sflag [#allocation9], %s360
          %s362 = sand.u32 %s129, 1
          %s363 = smul.addr %s362, 8
          %s364 = scalar_lea.vmem [#allocation8], %s363
          %366 = dma.done %s361, 128
        $region60: #{tpu_custom_call.1} parent=51 // pred_fallthru
          _
      $region52: #{tpu_custom_call.1} parent=5 // pred_fallthru
        _
    $region6: #{tpu_custom_call.1} parent=1 // loop_footer
      %s25 = sadd.s32 1, %s21
    $region7: #{tpu_custom_call.1} parent=1 // loop_footer_branch
      %20 = sbr.rel target = $region3
    $region8: #{tpu_custom_call.1} parent=1 // loop_exit
      _
    %367 = vsyncpa [#allocation3], 1
    %s368 = scalar_lea.sflag [#allocation3], 1
    %369 = vsyncpa %s368, 1
    %370 = vsyncpa [#allocation6], 1
    %371 = vsyncpa [#allocation4], 1
    %s372 = scalar_lea.sflag [#allocation4], 1
    %373 = vsyncpa %s372, 1
    %374 = vsyncpa [#allocation9], 1
    %s375 = scalar_lea.sflag [#allocation9], 1
    %376 = vsyncpa %s375, 1

</llo_original>
